<compile_context>
chip_gen: v6e
topology: v6e:2x2x1
jax: 0.10.0
libtpu: 0.0.40
codegen_flags: <defaults>
</compile_context>

<pallas_src>
import functools

import jax
import jax.numpy as jnp
from jax.experimental import pallas as pl
from jax.experimental.pallas import tpu as pltpu


def _round_up(x: int, m: int) -> int:
    return ((x + m - 1) // m) * m


def skipgram_kernel(x_ref, w_ref, b_ref, out_ref):
    # x_ref  : VMEM (Bp, Ep) bf16 -- gathered embeddings, resident (constant index_map)
    # w_ref  : VMEM (Ep, TN) bf16 -- Linear weight tile, already (K, N) layout
    # b_ref  : VMEM (1,  TN) f32  -- Linear bias tile
    # out_ref: VMEM (Bp, TN) f32  -- logits tile
    logits = jax.lax.dot_general(
        x_ref[...], w_ref[...],
        dimension_numbers=(((1,), (0,)), ((), ())),
        preferred_element_type=jnp.float32,
    )
    out_ref[...] = logits + b_ref[...]


@functools.partial(jax.jit, static_argnames=("block_v",))
def skipgram_forward(indices, emb_table, lin_weight, lin_bias, *, block_v=4096):
    """Forward pass of SkipGramWithEmbedding.

    indices:    (B,)   int   -- word indices
    emb_table:  (V, E) f32   -- nn.Embedding weight
    lin_weight: (V, E) f32   -- nn.Linear weight (PyTorch layout)
    lin_bias:   (V,)   f32   -- nn.Linear bias
    returns:    (B, V) f32 logits
    """
    compute_dtype = jnp.bfloat16
    B = indices.shape[0]
    V, E = emb_table.shape

    # Padded / lane-dense sizes. Bp multiple of 16 (bf16 sublane packing),
    # Ep / TN multiples of 128 (lane width).
    Bp = _round_up(max(B, 16), 16)
    Ep = _round_up(E, 128)
    Vp = _round_up(V, 128)
    TN = min(_round_up(block_v, 128), Vp)   # vocab tile, multiple of 128
    Vp = _round_up(Vp, TN)
    num_v_tiles = Vp // TN

    # Clamp indices (nn.Embedding would error on OOB; we must not gather OOB).
    idx = jnp.clip(indices.astype(jnp.int32), 0, V - 1)

    # Wrapper-side gather: (B, E) -> padded (Bp, Ep) bf16 activation matrix.
    x = emb_table.astype(compute_dtype)[idx]
    x = jnp.pad(x, ((0, Bp - B), (0, Ep - E)))

    # Pre-transpose the Linear weight once: (V, E) -> (Ep, Vp), bf16.
    w_t = jnp.pad(lin_weight.astype(compute_dtype).T, ((0, Ep - E), (0, Vp - V)))
    bias = jnp.pad(lin_bias.astype(jnp.float32), (0, Vp - V)).reshape(1, Vp)

    cost = pl.CostEstimate(
        flops=2 * B * V * E,
        transcendentals=0,
        bytes_accessed=(Vp * Ep * 2          # weight stream (bf16)
                        + Bp * Ep * 2        # resident activations
                        + Vp * 4             # bias
                        + Bp * Vp * 4),      # logits writeback
    )

    out_padded = pl.pallas_call(
        skipgram_kernel,
        out_shape=jax.ShapeDtypeStruct((Bp, Vp), jnp.float32),
        grid=(num_v_tiles,),
        in_specs=[
            pl.BlockSpec((Bp, Ep), lambda j: (0, 0)),   # activations, resident
            pl.BlockSpec((Ep, TN), lambda j: (0, j)),   # weight tile (K, N)
            pl.BlockSpec((1, TN), lambda j: (0, j)),    # bias tile
        ],
        out_specs=pl.BlockSpec((Bp, TN), lambda j: (0, j)),
        compiler_params=pltpu.CompilerParams(
            # V tiles are independent -> shard across v7x's 2 TensorCores.
            dimension_semantics=("parallel",),
        ),
        cost_estimate=cost,
    )(x, w_t, bias)

    return out_padded[:B, :V]


if __name__ == "__main__":
    # Vocabulary from the original script: 9 unique words.
    sentences = ['Kage is Teacher', 'Mazong is Boss', 'Niuzong is Boss',
                 'Xiaobing is Student', 'Xiaoxue is Student']
    words = ' '.join(sentences).split()
    word_list = list(set(words))
    voc_size = len(word_list)          # 9
    embedding_size = 32
    batch = 8

    key = jax.random.PRNGKey(0)
    k_emb, k_w, k_b, k_idx = jax.random.split(key, 4)

    # Deterministic parameter init mirroring nn.Embedding (N(0,1)) and
    # nn.Linear (U(-1/sqrt(fan_in), 1/sqrt(fan_in))).
    emb_table = jax.random.normal(k_emb, (voc_size, embedding_size), jnp.float32)
    bound = 1.0 / jnp.sqrt(embedding_size)
    lin_weight = jax.random.uniform(k_w, (voc_size, embedding_size), jnp.float32,
                                    -bound, bound)
    lin_bias = jax.random.uniform(k_b, (voc_size,), jnp.float32, -bound, bound)

    # Example input: batch of center-word indices.
    X = jax.random.randint(k_idx, (batch,), 0, voc_size, jnp.int32)

    out = skipgram_forward(X, emb_table, lin_weight, lin_bias)
    out = jax.block_until_ready(out)

    # Reference in plain JAX with the same bf16 cast as the kernel
    # (f32 accumulation / f32 output).
    emb_c = emb_table.astype(jnp.bfloat16).astype(jnp.float32)
    w_c = lin_weight.astype(jnp.bfloat16).astype(jnp.float32)
    ref = emb_c[X] @ w_c.T + lin_bias

    assert out.shape == (batch, voc_size)
    assert jnp.allclose(out, ref, atol=1e-4, rtol=1e-4), (
        float(jnp.max(jnp.abs(out - ref))))

    print("KERNEL_OK")
</pallas_src>

<mosaic_0001>
module attributes {stable_mosaic.version = 11 : i64} {
  func.func @skipgram_kernel(%arg0: i32, %arg1: memref<16x128xbf16, #tpu.memory_space<vmem>>, %arg2: memref<128x128xbf16, #tpu.memory_space<vmem>>, %arg3: memref<1x128xf32, #tpu.memory_space<vmem>>, %arg4: memref<16x128xf32, #tpu.memory_space<vmem>>) attributes {dimension_semantics = [#tpu.dimension_semantics<parallel>], iteration_bounds = array<i64: 1>, scalar_prefetch = 0 : i64, scratch_operands = 0 : i64, tpu.core_type = #tpu.core_type<tc>, window_params = [{pipeline_mode = #tpu.pipeline_mode<synchronous>, transform_indices = @transform_0, window_bounds = array<i64: 16, 128>}, {transform_indices = @transform_1, window_bounds = array<i64: 128, 128>}, {transform_indices = @transform_2, window_bounds = array<i64: 1, 128>}, {transform_indices = @transform_3, window_bounds = array<i64: 16, 128>}]} {
    %c0 = arith.constant 0 : index
    %c0_0 = arith.constant 0 : index
    %0 = vector.load %arg1[%c0, %c0_0] : memref<16x128xbf16, #tpu.memory_space<vmem>>, vector<16x128xbf16>
    %c0_1 = arith.constant 0 : index
    %c0_2 = arith.constant 0 : index
    %1 = vector.load %arg2[%c0_1, %c0_2] : memref<128x128xbf16, #tpu.memory_space<vmem>>, vector<128x128xbf16>
    %cst = arith.constant dense<0.000000e+00> : vector<16x128xf32>
    %2 = tpu.matmul %0, %1, %cst {dimension_numbers = #tpu.dot_dimension_numbers<[1], [0], [0], [1], [0, 0, 1, 1], [], []>} : vector<16x128xbf16>, vector<128x128xbf16>, vector<16x128xf32> -> vector<16x128xf32>
    %c0_3 = arith.constant 0 : index
    %c0_4 = arith.constant 0 : index
    %3 = vector.load %arg3[%c0_3, %c0_4] : memref<1x128xf32, #tpu.memory_space<vmem>>, vector<1x128xf32>
    %4 = vector.broadcast %3 : vector<1x128xf32> to vector<16x128xf32>
    %5 = arith.addf %2, %4 : vector<16x128xf32>
    %c0_5 = arith.constant 0 : index
    %c0_6 = arith.constant 0 : index
    %6 = vector.load %arg4[%c0_5, %c0_6] : memref<16x128xf32, #tpu.memory_space<vmem>>, vector<16x128xf32>
    tpu.vector_store %arg4[%c0_5, %c0_6], %5 {strides = array<i32>} : memref<16x128xf32, #tpu.memory_space<vmem>>, vector<16x128xf32>,
    return
  }
  func.func @transform_0(%arg0: i32) -> (i32, i32) {
    %c0_i32 = arith.constant 0 : i32
    %c0_i32_0 = arith.constant 0 : i32
    %c0_i32_1 = arith.constant 0 : i32
    return %c0_i32, %c0_i32_0 : i32, i32
  }
  func.func @transform_1(%arg0: i32) -> (i32, i32) {
    %c0_i32 = arith.constant 0 : i32
    %c0_i32_0 = arith.constant 0 : i32
    return %c0_i32, %arg0 : i32, i32
  }
  func.func @transform_2(%arg0: i32) -> (i32, i32) {
    %c0_i32 = arith.constant 0 : i32
    %c0_i32_0 = arith.constant 0 : i32
    return %c0_i32, %arg0 : i32, i32
  }
  func.func @transform_3(%arg0: i32) -> (i32, i32) {
    %c0_i32 = arith.constant 0 : i32
    %c0_i32_0 = arith.constant 0 : i32
    return %c0_i32, %arg0 : i32, i32
  }
}

</mosaic_0001>

<llo_original>
// kernel: skipgram_forward.1
$region0: #{skipgram_forward.1}
  #allocation0 [shape = 'u32[]', space=smem, size = 0x4, offset = 0x4, fixed_abs, tag = 'smem constant byte address 0x4 - core index']
  #allocation1 [shape = 'u32[144,128]{1,0:T(1,128)}', space=vmem, size = 0x12000, scoped, tag = 'internal scratch']
  %s0 = inlined_call_operand.vmem [shape: bf16[16,128], index: 0, kind: input, shape index: {}]
  %s1 = inlined_call_operand.vmem [shape: bf16[128,128], index: 1, kind: input, shape index: {}]
  %s2 = inlined_call_operand.vmem [shape: f32[1,128], index: 2, kind: input, shape index: {}]
  %s3 = inlined_call_operand.vmem [shape: f32[16,128], index: 3, kind: output, shape index: {}]
  %s4 = sld [smem:[#allocation0]]
  $region22: #{skipgram_forward.1} parent=0
    _
  %s6 = ssub.s32 1, %s4
  %s7 = scalar_select 0, %s6, %s4
  // Predicated region
  $region2: #{skipgram_forward.1} parent=0 // pred_check
    _
  $region3: #{skipgram_forward.1} parent=0 // pred_check_branch
    %9 = sbr.rel (0) target = $region5
  $region4: #{skipgram_forward.1} parent=0 // pred_region
    _
  $region5: #{skipgram_forward.1} parent=0 // pred_fallthru
    _
  // Predicated region
  $region6: #{skipgram_forward.1} parent=0 // pred_check
    _
  $region7: #{skipgram_forward.1} parent=0 // pred_check_branch
    %11 = sbr.rel (0) target = $region9
  $region8: #{skipgram_forward.1} parent=0 // pred_region
    _
  $region9: #{skipgram_forward.1} parent=0 // pred_fallthru
    _
  // Predicated region
  $region10: #{skipgram_forward.1} parent=0 // pred_check
    _
  $region11: #{skipgram_forward.1} parent=0 // pred_check_branch
    %13 = sbr.rel (0) target = $region13
  $region12: #{skipgram_forward.1} parent=0 // pred_region
    _
  $region13: #{skipgram_forward.1} parent=0 // pred_fallthru
    _
  %v15 = vld [vmem:[%s0] sm:$0xf]
  %v16 = vld [vmem:[%s0 + $0x4] sm:$0xf]
  %v17 = vld [vmem:[%s1] sm:$0xf]
  %v18 = vld [vmem:[%s1 + $0x4] sm:$0xf]
  %v19 = vld [vmem:[%s1 + $0x8] sm:$0xf]
  %v20 = vld [vmem:[%s1 + $0xc] sm:$0xf]
  %v21 = vld [vmem:[%s1 + $0x10] sm:$0xf]
  %v22 = vld [vmem:[%s1 + $0x14] sm:$0xf]
  %v23 = vld [vmem:[%s1 + $0x18] sm:$0xf]
  %v24 = vld [vmem:[%s1 + $0x1c] sm:$0xf]
  %v25 = vld [vmem:[%s1 + $0x20] sm:$0xf]
  %v26 = vld [vmem:[%s1 + $0x24] sm:$0xf]
  %v27 = vld [vmem:[%s1 + $0x28] sm:$0xf]
  %v28 = vld [vmem:[%s1 + $0x2c] sm:$0xf]
  %v29 = vld [vmem:[%s1 + $0x30] sm:$0xf]
  %v30 = vld [vmem:[%s1 + $0x34] sm:$0xf]
  %v31 = vld [vmem:[%s1 + $0x38] sm:$0xf]
  %v32 = vld [vmem:[%s1 + $0x3c] sm:$0xf]
  %v33 = vld [vmem:[%s2] sm:$0x1]
  %v35 = vlaneseq
  %v36 = vshrl.u32 %v35, 7
  %v37 = vsub.s32 0, %v36
  %v38 = vrot.slane %v33, %v37
  %v42 = vunpack.c.l.b16 %v15
  %v43 = vunpack.c.l.b16 %v16
  %v44 = vpack.c.b16 %v43, %v42
  %v62 = vunpack.c.l.b16 %v17
  %v63 = vunpack.c.l.b16 %v18
  %v64 = vunpack.c.l.b16 %v19
  %v65 = vunpack.c.l.b16 %v20
  %v66 = vunpack.c.l.b16 %v21
  %v67 = vunpack.c.l.b16 %v22
  %v68 = vunpack.c.l.b16 %v23
  %v69 = vunpack.c.l.b16 %v24
  %v70 = vunpack.c.l.b16 %v25
  %v71 = vunpack.c.l.b16 %v26
  %v72 = vunpack.c.l.b16 %v27
  %v73 = vunpack.c.l.b16 %v28
  %v74 = vunpack.c.l.b16 %v29
  %v75 = vunpack.c.l.b16 %v30
  %v76 = vunpack.c.l.b16 %v31
  %v77 = vunpack.c.l.b16 %v32
  %v78 = vpack.c.b16 %v63, %v62
  %v79 = vpack.c.b16 %v65, %v64
  %v80 = vpack.c.b16 %v67, %v66
  %v81 = vpack.c.b16 %v69, %v68
  %v82 = vpack.c.b16 %v71, %v70
  %v83 = vpack.c.b16 %v73, %v72
  %v84 = vpack.c.b16 %v75, %v74
  %v85 = vpack.c.b16 %v77, %v76
  %94 = vmatprep.subr.bf16.mxu0 0
  %95 = vmatpush1.bf16.msra.mxu0 %v85
  %96 = vmatprep.subr.bf16.mxu0 0
  %97 = vmatpush1.bf16.msra.mxu0 %v84
  %98 = vmatprep.subr.bf16.mxu0 0
  %99 = vmatpush1.bf16.msra.mxu0 %v83
  %100 = vmatprep.subr.bf16.mxu0 0
  %101 = vmatpush1.bf16.msra.mxu0 %v82
  %102 = vmatprep.subr.bf16.mxu0 0
  %103 = vmatpush1.bf16.msra.mxu0 %v81
  %104 = vmatprep.subr.bf16.mxu0 0
  %105 = vmatpush1.bf16.msra.mxu0 %v80
  %106 = vmatprep.subr.bf16.mxu0 0
  %107 = vmatpush1.bf16.msra.mxu0 %v79
  %108 = vmatprep.subr.bf16.mxu0 0
  %109 = vmatpush1.bf16.msra.mxu0 %v78
  %110 = vmatprep.subr.bf16.mxu0 0
  %111 = vmatpush2.bf16.msra.mxu0 0
  %112 = vmatprep.subr.bf16.mxu0 0
  %113 = vmatpush2.bf16.msra.mxu0 0
  %114 = vmatprep.subr.bf16.mxu0 0
  %115 = vmatpush2.bf16.msra.mxu0 0
  %116 = vmatprep.subr.bf16.mxu0 0
  %117 = vmatpush2.bf16.msra.mxu0 0
  %118 = vmatprep.subr.bf16.mxu0 0
  %119 = vmatpush2.bf16.msra.mxu0 0
  %120 = vmatprep.subr.bf16.mxu0 0
  %121 = vmatpush2.bf16.msra.mxu0 0
  %122 = vmatprep.subr.bf16.mxu0 0
  %123 = vmatpush2.bf16.msra.mxu0 0
  %124 = vmatprep.subr.bf16.mxu0 0
  %125 = vmatpush2.bf16.msra.mxu0 0
  %126 = vmatprep.mubr.bf16.mxu0 0
  %127 = vmatmul.mubr.bf16.gmra.mxu0 %v44
  %v128 = vpop.f32.mrf.mxu0
  %v129 = vadd.f32 %v38, %v128
  %v130 = vpop.f32.mrf.mxu0
  %v131 = vpop.f32.mrf.mxu0
  %v132 = vadd.f32 %v38, %v131
  %v133 = vpop.f32.mrf.mxu0
  %134 = vdwg.mxu0
  %135 = vst [vmem:[%s3] sm:$0xff] %v129
  %136 = vst [vmem:[%s3 + $0x8] sm:$0xff] %v132
  // Predicated region
  $region14: #{skipgram_forward.1} parent=0 // pred_check
    _
  $region15: #{skipgram_forward.1} parent=0 // pred_check_branch
    %138 = sbr.rel (0) target = $region17
  $region16: #{skipgram_forward.1} parent=0 // pred_region
    _
  $region17: #{skipgram_forward.1} parent=0 // pred_fallthru
    _
  // Predicated region
  $region18: #{skipgram_forward.1} parent=0 // pred_check
    _
  $region19: #{skipgram_forward.1} parent=0 // pred_check_branch
    %140 = sbr.rel (0) target = $region21
  $region20: #{skipgram_forward.1} parent=0 // pred_region
    _
  $region21: #{skipgram_forward.1} parent=0 // pred_fallthru
    _

</llo_original>
